<compile_context>
chip_gen: v7x
topology: tpu7x:2x2x1
jax: 0.10.0
libtpu: 0.0.40
codegen_flags: <defaults>
</compile_context>

<pallas_src>
import functools

import jax
import jax.numpy as jnp
from jax.experimental import pallas as pl
from jax.experimental.pallas import tpu as pltpu


def _round_up(n: int, m: int) -> int:
    return ((n + m - 1) // m) * m


def _pad_fused_width(n_raw: int) -> int:
    """128-align the fused output width; bump to 256-align (v6e/v7x MXU tile)
    only when the extra zero columns add <= 1/8 more MXU work."""
    n128 = _round_up(n_raw, 128)
    n256 = _round_up(n_raw, 256)
    return n256 if (n256 - n128) * 8 <= n128 else n128


# ---------------------------------------------------------------------------
# Kernels
# ---------------------------------------------------------------------------
def _dpp_kernel_collapsed(x_ref, w1_ref, b1_ref, out_ref, *, f_out_p):
    """Single fused matmul: columns are [z_a | z_b | g_logits] (+ zero pad)."""
    h = jnp.dot(x_ref[...], w1_ref[...], preferred_element_type=jnp.float32)
    h = h + b1_ref[...]                                  # f32 epilogue (v5e-safe)
    z_a = h[:, :f_out_p]
    z_b = h[:, f_out_p:2 * f_out_p]
    alpha = jax.nn.sigmoid(h[:, 2 * f_out_p:3 * f_out_p])   # EUP
    # alpha*z_a + (1-alpha)*z_b  ==  z_b + alpha*(z_a - z_b)
    out_ref[...] = (z_b + alpha * (z_a - z_b)).astype(out_ref.dtype)


def _dpp_kernel_twostage(x_ref, w1_ref, bab_ref, wgu_ref, bgu_ref, out_ref,
                         *, f_out_p, g_p):
    """Fused first stage [x_g | z_a | z_b] + dependent gating matmul.
    The gating slab is first so it drains the MXU result FIFO first and the
    dependent matmul can start while z_a/z_b columns are still draining."""
    h = jnp.dot(x_ref[...], w1_ref[...], preferred_element_type=jnp.float32)
    x_g = h[:, :g_p].astype(wgu_ref.dtype)               # b_g_shared folded into bgu
    g_logits = (jnp.dot(x_g, wgu_ref[...], preferred_element_type=jnp.float32)
                + bgu_ref[...])
    alpha = jax.nn.sigmoid(g_logits)
    zab = h[:, g_p:g_p + 2 * f_out_p] + bab_ref[...]
    z_a = zab[:, :f_out_p]
    z_b = zab[:, f_out_p:]
    out_ref[...] = (z_b + alpha * (z_a - z_b)).astype(out_ref.dtype)


# ---------------------------------------------------------------------------
# One-time parameter preparation (hoisted out of the forward path)
# ---------------------------------------------------------------------------
def prepare_dpp_params(params, *, dtype=jnp.float32, collapse_gating=None):
    """Transpose to (in, out), zero-pad output dims to lane-dense widths, fuse
    the first-stage weights, and (optionally) collapse the gating head.
    Biases are kept in f32 regardless of `dtype` so the epilogue stays f32."""
    F_out, F_in = params["w_a"].shape
    G = params["w_g_shared"].shape[0]
    F_out_p = _round_up(F_out, 128)
    G_p = _round_up(G, 128)

    if collapse_gating is None:
        # Padded-MXU-work comparison: the collapsed gating slab costs
        # F_in*F_out_p, the two-stage path costs F_in*G_p + G_p*F_out_p.
        collapse_gating = F_in * F_out_p <= G_p * (F_in + F_out_p)

    def wt_pad(w, out_p):                     # (out, in) -> (in, out_p)  f32
        wt = jnp.asarray(w, jnp.float32).T
        return jnp.pad(wt, ((0, 0), (0, out_p - wt.shape[1])))

    def b_pad(b, out_p):                      # (out,) -> (1, out_p)  f32
        b = jnp.asarray(b, jnp.float32)
        return jnp.pad(b, (0, out_p - b.shape[0]))[None, :]

    w_a_t = wt_pad(params["w_a"], F_out_p)
    w_b_t = wt_pad(params["w_b"], F_out_p)
    b_a = b_pad(params["b_a"], F_out_p)
    b_b = b_pad(params["b_b"], F_out_p)

    # b_g_shared folded through w_g_unit (exact up to FP reassociation).
    b_geff = b_pad(jnp.asarray(params["b_g_shared"], jnp.float32)
                   @ jnp.asarray(params["w_g_unit"], jnp.float32).T
                   + jnp.asarray(params["b_g_unit"], jnp.float32), F_out_p)

    if collapse_gating:
        # g_logits = x @ (w_g_shared^T @ w_g_unit^T) + b_geff
        w_geff = (jnp.asarray(params["w_g_shared"], jnp.float32).T
                  @ jnp.asarray(params["w_g_unit"], jnp.float32).T)
        w_geff = jnp.pad(w_geff, ((0, 0), (0, F_out_p - F_out)))
        n_raw = 3 * F_out_p
        N1 = _pad_fused_width(n_raw)
        w1 = jnp.pad(jnp.concatenate([w_a_t, w_b_t, w_geff], axis=1),
                     ((0, 0), (0, N1 - n_raw)))
        b1 = jnp.pad(jnp.concatenate([b_a, b_b, b_geff], axis=1),
                     ((0, 0), (0, N1 - n_raw)))
        prepared = {"w1": w1.astype(dtype), "b1": b1}
    else:
        w_g_t = wt_pad(params["w_g_shared"], G_p)
        n_raw = G_p + 2 * F_out_p
        N1 = _pad_fused_width(n_raw)
        w1 = jnp.pad(jnp.concatenate([w_g_t, w_a_t, w_b_t], axis=1),
                     ((0, 0), (0, N1 - n_raw)))
        wgu = jnp.pad(jnp.asarray(params["w_g_unit"], jnp.float32).T,
                      ((0, G_p - G), (0, F_out_p - F_out)))
        prepared = {"w1": w1.astype(dtype),
                    "bab": jnp.concatenate([b_a, b_b], axis=1),
                    "wgu": wgu.astype(dtype),
                    "bgu": b_geff}

    dims = {"F_in": F_in, "F_out": F_out, "G": G,
            "F_out_p": F_out_p, "G_p": G_p, "N1": N1,
            "collapsed": bool(collapse_gating)}
    return prepared, dims


# ---------------------------------------------------------------------------
# Forward wrapper
# ---------------------------------------------------------------------------
def dpp_layer_shared_g(x, prepared, dims, *, batch_tile=512,
                       out_dtype=jnp.float32, return_padded=False,
                       vmem_budget_bytes=40 << 20):
    """x: (B, F_in).  `prepared`/`dims` from prepare_dpp_params (call once)."""
    B, F_in = x.shape
    assert F_in == dims["F_in"]
    F_out, F_out_p, G_p, N1 = dims["F_out"], dims["F_out_p"], dims["G_p"], dims["N1"]
    collapsed = dims["collapsed"]

    w_dtype = prepared["w1"].dtype
    x = x.astype(w_dtype)
    in_bytes = jnp.dtype(w_dtype).itemsize
    out_bytes = jnp.dtype(out_dtype).itemsize

    # ---- batch tile derived from a VMEM budget (v7x physical VMEM = 64 MiB) ----
    weight_bytes = sum(int(v.size) * v.dtype.itemsize for v in prepared.values())
    per_row = (2 * F_in * in_bytes          # x tile (double-buffered)
               + 2 * F_out_p * out_bytes    # out tile (double-buffered)
               + N1 * 4                     # fused h intermediate (f32)
               + 4 * F_out_p * 4)           # epilogue temporaries (f32)
    tb_fit = (vmem_budget_bytes - 2 * weight_bytes) // max(per_row, 1)
    tb_fit = max(8, (tb_fit // 8) * 8)
    cap = max(8, min(batch_tile, tb_fit, 1024))

    # Tile count: bound batch padding to ~8*n_tiles rows and give batches >= 16
    # at least 2 tiles so the "parallel" grid axis can feed both v7x TCs.
    B_r = _round_up(B, 8)
    n_tiles = max(pl.cdiv(B_r, cap), 2 if B_r >= 16 else 1)
    TB = _round_up(pl.cdiv(B_r, n_tiles), 8)
    B_p = _round_up(B, TB)
    if B_p != B:
        x = jnp.pad(x, ((0, B_p - B), (0, 0)))
    grid = (B_p // TB,)

    # Scoped-VMEM limit from the real working set (+headroom, floored at 32 MiB).
    ws = 2 * weight_bytes + TB * per_row
    vmem_limit = int(max(32 << 20, min(ws + ws // 4 + (2 << 20), 120 << 20)))

    def _call(use_buffered):
        # Resident operands (constant index_map) need only one buffer.
        wkw = ({"pipeline_mode": pl.Buffered(1)}
               if (use_buffered and hasattr(pl, "Buffered")) else {})
        x_spec = pl.BlockSpec((TB, F_in), lambda i: (i, 0))
        out_spec = pl.BlockSpec((TB, F_out_p), lambda i: (i, 0))
        if collapsed:
            kernel = functools.partial(_dpp_kernel_collapsed, f_out_p=F_out_p)
            in_specs = [x_spec,
                        pl.BlockSpec((F_in, N1), lambda i: (0, 0), **wkw),
                        pl.BlockSpec((1, N1), lambda i: (0, 0), **wkw)]
            args = (x, prepared["w1"], prepared["b1"])
        else:
            kernel = functools.partial(_dpp_kernel_twostage,
                                       f_out_p=F_out_p, g_p=G_p)
            in_specs = [x_spec,
                        pl.BlockSpec((F_in, N1), lambda i: (0, 0), **wkw),
                        pl.BlockSpec((1, 2 * F_out_p), lambda i: (0, 0), **wkw),
                        pl.BlockSpec((G_p, F_out_p), lambda i: (0, 0), **wkw),
                        pl.BlockSpec((1, F_out_p), lambda i: (0, 0), **wkw)]
            args = (x, prepared["w1"], prepared["bab"],
                    prepared["wgu"], prepared["bgu"])
        return pl.pallas_call(
            kernel,
            out_shape=jax.ShapeDtypeStruct((B_p, F_out_p), out_dtype),
            grid=grid,
            in_specs=in_specs,
            out_specs=out_spec,
            compiler_params=pltpu.CompilerParams(
                dimension_semantics=("parallel",),
                vmem_limit_bytes=vmem_limit),
        )(*args)

    try:
        out_p = _call(True)
    except Exception:                         # pipeline_mode unsupported -> retry
        out_p = _call(False)

    if return_padded:
        # Lane-dense (B, F_out_p) layout for a fused consumer (skips the
        # padded-output writeback slice; padded columns are exactly 0).
        return out_p[:B] if B_p != B else out_p
    return out_p[:B, :F_out]


# ---------------------------------------------------------------------------
# Synthetic init + pure-JAX reference
# ---------------------------------------------------------------------------
def _init_params(key, input_features, output_features, shared_g_dim):
    ks = jax.random.split(key, 8)

    def kaiming_uniform(k, out_f, in_f):
        bound = (6.0 / (6.0 * in_f)) ** 0.5
        return jax.random.uniform(k, (out_f, in_f), jnp.float32, -bound, bound)

    def bias_uniform(k, out_f, fan_in):
        bound = 1.0 / (fan_in ** 0.5)
        return jax.random.uniform(k, (out_f,), jnp.float32, -bound, bound)

    return {
        "w_a": kaiming_uniform(ks[0], output_features, input_features),
        "b_a": bias_uniform(ks[1], output_features, input_features),
        "w_b": kaiming_uniform(ks[2], output_features, input_features),
        "b_b": bias_uniform(ks[3], output_features, input_features),
        "w_g_shared": kaiming_uniform(ks[4], shared_g_dim, input_features),
        "b_g_shared": bias_uniform(ks[5], shared_g_dim, input_features),
        "w_g_unit": kaiming_uniform(ks[6], output_features, shared_g_dim),
        "b_g_unit": bias_uniform(ks[7], output_features, shared_g_dim),
    }


def _reference(x, p):
    z_a = x @ p["w_a"].T + p["b_a"]
    z_b = x @ p["w_b"].T + p["b_b"]
    xg = x @ p["w_g_shared"].T + p["b_g_shared"]
    g_logits = xg @ p["w_g_unit"].T + p["b_g_unit"]
    alpha = jax.nn.sigmoid(g_logits)
    return alpha * z_a + (1.0 - alpha) * z_b


if __name__ == "__main__":
    key = jax.random.PRNGKey(0)
    k_x, k_p = jax.random.split(key)

    batch = 8
    input_features = 32
    output_features = 16
    shared_g_dim = 8

    x = jax.random.normal(k_x, (batch, input_features), jnp.float32)
    params = _init_params(k_p, input_features, output_features, shared_g_dim)
    ref = _reference(x, params)

    # 1) f32, auto path (collapsed gating head — G is tiny vs its 128-padding).
    prep_c, dims_c = prepare_dpp_params(params)
    prep_c = jax.tree_util.tree_map(jax.block_until_ready, prep_c)
    out_c = jax.block_until_ready(dpp_layer_shared_g(x, prep_c, dims_c))
    assert out_c.shape == (batch, output_features)
    assert jnp.allclose(out_c, ref, atol=1e-4, rtol=1e-4), "collapsed f32 mismatch"

    # 2) f32, forced two-stage gating path (the large-G variant of the kernel).
    prep_t, dims_t = prepare_dpp_params(params, collapse_gating=False)
    out_t = jax.block_until_ready(dpp_layer_shared_g(x, prep_t, dims_t))
    assert jnp.allclose(out_t, ref, atol=1e-4, rtol=1e-4), "two-stage f32 mismatch"

    # 3) bf16 operands (v6e/v7x fast path): f32 accumulation + f32 epilogue.
    prep_b, dims_b = prepare_dpp_params(params, dtype=jnp.bfloat16)
    out_b = jax.block_until_ready(dpp_layer_shared_g(x, prep_b, dims_b))
    assert jnp.allclose(out_b, ref, atol=1.5e-1, rtol=5e-2), "bf16 path mismatch"

    print("KERNEL_OK")
</pallas_src>

<mosaic_0001>
module attributes {stable_mosaic.version = 11 : i64} {
  func.func @_dpp_kernel_collapsed(%arg0: i32, %arg1: memref<8x32xf32, #tpu.memory_space<vmem>>, %arg2: memref<32x384xf32, #tpu.memory_space<vmem>>, %arg3: memref<1x384xf32, #tpu.memory_space<vmem>>, %arg4: memref<8x128xf32, #tpu.memory_space<vmem>>) attributes {dimension_semantics = [#tpu.dimension_semantics<parallel>], iteration_bounds = array<i64: 1>, scalar_prefetch = 0 : i64, scratch_operands = 0 : i64, tpu.core_type = #tpu.core_type<tc>, window_params = [{transform_indices = @transform_0, window_bounds = array<i64: 8, 32>}, {pipeline_mode = #tpu.pipeline_mode<synchronous>, transform_indices = @transform_1, window_bounds = array<i64: 32, 384>}, {pipeline_mode = #tpu.pipeline_mode<synchronous>, transform_indices = @transform_2, window_bounds = array<i64: 1, 384>}, {transform_indices = @transform_3, window_bounds = array<i64: 8, 128>}]} {
    %c0 = arith.constant 0 : index
    %c0_0 = arith.constant 0 : index
    %0 = vector.load %arg1[%c0, %c0_0] : memref<8x32xf32, #tpu.memory_space<vmem>>, vector<8x32xf32>
    %c0_1 = arith.constant 0 : index
    %c0_2 = arith.constant 0 : index
    %1 = vector.load %arg2[%c0_1, %c0_2] : memref<32x384xf32, #tpu.memory_space<vmem>>, vector<32x384xf32>
    %cst = arith.constant dense<0.000000e+00> : vector<8x384xf32>
    %2 = tpu.matmul %0, %1, %cst {dimension_numbers = #tpu.dot_dimension_numbers<[1], [0], [0], [1], [0, 0, 1, 1], [], []>} : vector<8x32xf32>, vector<32x384xf32>, vector<8x384xf32> -> vector<8x384xf32>
    %c0_3 = arith.constant 0 : index
    %c0_4 = arith.constant 0 : index
    %3 = vector.load %arg3[%c0_3, %c0_4] : memref<1x384xf32, #tpu.memory_space<vmem>>, vector<1x384xf32>
    %4 = vector.broadcast %3 : vector<1x384xf32> to vector<8x384xf32>
    %5 = arith.addf %2, %4 : vector<8x384xf32>
    %6 = vector.extract_strided_slice %5 {offsets = [0, 0], sizes = [8, 128], strides = [1, 1]} : vector<8x384xf32> to vector<8x128xf32>
    %7 = vector.extract_strided_slice %5 {offsets = [0, 128], sizes = [8, 128], strides = [1, 1]} : vector<8x384xf32> to vector<8x128xf32>
    %8 = vector.extract_strided_slice %5 {offsets = [0, 256], sizes = [8, 128], strides = [1, 1]} : vector<8x384xf32> to vector<8x128xf32>
    %9 = arith.negf %8 : vector<8x128xf32>
    %10 = math.exp %9 : vector<8x128xf32>
    %cst_5 = arith.constant 1.000000e+00 : f32
    %11 = vector.broadcast %cst_5 : f32 to vector<8x128xf32>
    %12 = arith.addf %11, %10 : vector<8x128xf32>
    %13 = arith.divf %11, %12 : vector<8x128xf32>
    %14 = arith.subf %6, %7 : vector<8x128xf32>
    %15 = arith.mulf %13, %14 : vector<8x128xf32>
    %16 = arith.addf %7, %15 : vector<8x128xf32>
    %c0_6 = arith.constant 0 : index
    %c0_7 = arith.constant 0 : index
    %17 = vector.load %arg4[%c0_6, %c0_7] : memref<8x128xf32, #tpu.memory_space<vmem>>, vector<8x128xf32>
    tpu.vector_store %arg4[%c0_6, %c0_7], %16 {strides = array<i32>} : memref<8x128xf32, #tpu.memory_space<vmem>>, vector<8x128xf32>,
    return
  }
  func.func @transform_0(%arg0: i32) -> (i32, i32) {
    %c0_i32 = arith.constant 0 : i32
    %c0_i32_0 = arith.constant 0 : i32
    return %arg0, %c0_i32 : i32, i32
  }
  func.func @transform_1(%arg0: i32) -> (i32, i32) {
    %c0_i32 = arith.constant 0 : i32
    %c0_i32_0 = arith.constant 0 : i32
    %c0_i32_1 = arith.constant 0 : i32
    return %c0_i32, %c0_i32_0 : i32, i32
  }
  func.func @transform_2(%arg0: i32) -> (i32, i32) {
    %c0_i32 = arith.constant 0 : i32
    %c0_i32_0 = arith.constant 0 : i32
    %c0_i32_1 = arith.constant 0 : i32
    return %c0_i32, %c0_i32_0 : i32, i32
  }
  func.func @transform_3(%arg0: i32) -> (i32, i32) {
    %c0_i32 = arith.constant 0 : i32
    %c0_i32_0 = arith.constant 0 : i32
    return %arg0, %c0_i32 : i32, i32
  }
}

module attributes {stable_mosaic.version = 11 : i64} {
  func.func @_dpp_kernel_collapsed(%arg0: i32, %arg1: memref<8x32xf32, #tpu.memory_space<vmem>>, %arg2: memref<32x384xf32, #tpu.memory_space<vmem>>, %arg3: memref<1x384xf32, #tpu.memory_space<vmem>>, %arg4: memref<8x128xf32, #tpu.memory_space<vmem>>) attributes {dimension_semantics = [#tpu.dimension_semantics<parallel>], iteration_bounds = array<i64: 1>, scalar_prefetch = 0 : i64, scratch_operands = 0 : i64, tpu.core_type = #tpu.core_type<tc>, window_params = [{transform_indices = @transform_0, window_bounds = array<i64: 8, 32>}, {pipeline_mode = #tpu.pipeline_mode<synchronous>, transform_indices = @transform_1, window_bounds = array<i64: 32, 384>}, {pipeline_mode = #tpu.pipeline_mode<synchronous>, transform_indices = @transform_2, window_bounds = array<i64: 1, 384>}, {transform_indices = @transform_3, window_bounds = array<i64: 8, 128>}]} {
    %c0 = arith.constant 0 : index
    %c0_0 = arith.constant 0 : index
    %0 = vector.load %arg1[%c0, %c0_0] : memref<8x32xf32, #tpu.memory_space<vmem>>, vector<8x32xf32>
    %c0_1 = arith.constant 0 : index
    %c0_2 = arith.constant 0 : index
    %1 = vector.load %arg2[%c0_1, %c0_2] : memref<32x384xf32, #tpu.memory_space<vmem>>, vector<32x384xf32>
    %cst = arith.constant dense<0.000000e+00> : vector<8x384xf32>
    %2 = tpu.matmul %0, %1, %cst {dimension_numbers = #tpu.dot_dimension_numbers<[1], [0], [0], [1], [0, 0, 1, 1], [], []>} : vector<8x32xf32>, vector<32x384xf32>, vector<8x384xf32> -> vector<8x384xf32>
    %c0_3 = arith.constant 0 : index
    %c0_4 = arith.constant 0 : index
    %3 = vector.load %arg3[%c0_3, %c0_4] : memref<1x384xf32, #tpu.memory_space<vmem>>, vector<1x384xf32>
    %4 = vector.broadcast %3 : vector<1x384xf32> to vector<8x384xf32>
    %5 = arith.addf %2, %4 : vector<8x384xf32>
    %6 = vector.extract_strided_slice %5 {offsets = [0, 0], sizes = [8, 128], strides = [1, 1]} : vector<8x384xf32> to vector<8x128xf32>
    %7 = vector.extract_strided_slice %5 {offsets = [0, 128], sizes = [8, 128], strides = [1, 1]} : vector<8x384xf32> to vector<8x128xf32>
    %8 = vector.extract_strided_slice %5 {offsets = [0, 256], sizes = [8, 128], strides = [1, 1]} : vector<8x384xf32> to vector<8x128xf32>
    %9 = arith.negf %8 : vector<8x128xf32>
    %10 = math.exp %9 : vector<8x128xf32>
    %cst_5 = arith.constant 1.000000e+00 : f32
    %11 = vector.broadcast %cst_5 : f32 to vector<8x128xf32>
    %12 = arith.addf %11, %10 : vector<8x128xf32>
    %13 = arith.divf %11, %12 : vector<8x128xf32>
    %14 = arith.subf %6, %7 : vector<8x128xf32>
    %15 = arith.mulf %13, %14 : vector<8x128xf32>
    %16 = arith.addf %7, %15 : vector<8x128xf32>
    %c0_6 = arith.constant 0 : index
    %c0_7 = arith.constant 0 : index
    %17 = vector.load %arg4[%c0_6, %c0_7] : memref<8x128xf32, #tpu.memory_space<vmem>>, vector<8x128xf32>
    tpu.vector_store %arg4[%c0_6, %c0_7], %16 {strides = array<i32>} : memref<8x128xf32, #tpu.memory_space<vmem>>, vector<8x128xf32>,
    return
  }
  func.func @transform_0(%arg0: i32) -> (i32, i32) {
    %c0_i32 = arith.constant 0 : i32
    %c0_i32_0 = arith.constant 0 : i32
    return %arg0, %c0_i32 : i32, i32
  }
  func.func @transform_1(%arg0: i32) -> (i32, i32) {
    %c0_i32 = arith.constant 0 : i32
    %c0_i32_0 = arith.constant 0 : i32
    %c0_i32_1 = arith.constant 0 : i32
    return %c0_i32, %c0_i32_0 : i32, i32
  }
  func.func @transform_2(%arg0: i32) -> (i32, i32) {
    %c0_i32 = arith.constant 0 : i32
    %c0_i32_0 = arith.constant 0 : i32
    %c0_i32_1 = arith.constant 0 : i32
    return %c0_i32, %c0_i32_0 : i32, i32
  }
  func.func @transform_3(%arg0: i32) -> (i32, i32) {
    %c0_i32 = arith.constant 0 : i32
    %c0_i32_0 = arith.constant 0 : i32
    return %arg0, %c0_i32 : i32, i32
  }
}

</mosaic_0001>

<llo_original>
// kernel: tpu_custom_call.1
$region0: #{tpu_custom_call.1}
  #allocation0 [shape = 'u32[]', space=smem, size = 0x4, offset = 0x4, fixed_abs, tag = 'smem constant byte address 0x4 - core index']
  #allocation1 [shape = 'u32[144,128]{1,0:T(1,128)}', space=vmem, size = 0x12000, scoped, tag = 'internal scratch']
  %s0 = inlined_call_operand.hbm [shape: f32[8,32], index: 0, kind: input, shape index: {}]
  %s1 = inlined_call_operand.hbm [shape: f32[32,384], index: 1, kind: input, shape index: {}]
  %s2 = inlined_call_operand.vmem [shape: f32[1,384], index: 2, kind: input, shape index: {}]
  %s3 = inlined_call_operand.hbm [shape: f32[8,128], index: 3, kind: output, shape index: {}]
  %s4 = sld [smem:[#allocation0]]
  $region30: #{tpu_custom_call.1} parent=0
    _
  %s6 = ssub.s32 1, %s4
  %s7 = scalar_select 0, %s6, %s4
  $region1: #{tpu_custom_call.1} parent=0
    #allocation2 [shape = 'u8[4096]{0}', space=vmem, size = 0x1000, scoped, tag = 'input window, operand 0, single buffered']
    #allocation3 [shape = 's32[1]{0}', space=sflag, size = 0x4, scoped, tag = 'scoped memory for tpu_custom_call.1']
    #allocation4 [shape = 's32[1]{0}', space=sflag, size = 0x4, scoped, tag = 'scoped memory for tpu_custom_call.1']
    #allocation5 [shape = 'u8[49152]{0}', space=vmem, size = 0xc000, scoped, tag = 'input window, operand 1, single buffered']
    #allocation6 [shape = 's32[1]{0}', space=sflag, size = 0x4, scoped, tag = 'scoped memory for tpu_custom_call.1']
    #allocation7 [shape = 'u8[4096]{0}', space=vmem, size = 0x1000, scoped, tag = 'output window, operand 0, single buffered']
    %8 = vsyncpa [#allocation3], 0
    %9 = vsyncpa [#allocation6], 0
    %10 = vsyncpa [#allocation4], 0
    // Predicated region
    $region2: #{tpu_custom_call.1} parent=1 // pred_check
      _
    $region3: #{tpu_custom_call.1} parent=1 // pred_check_branch
      %12 = sbr.rel (0) target = $region5
    $region4: #{tpu_custom_call.1} parent=1 // pred_region
      %s14 = ssub.s32 128, 128
      %15 = vsyncadd [#allocation3], %s14
      %s17 = sshll.u32 [#allocation2], 4
      %s18 = int_to_ptr.vmem [resolvable:$true] %s17
      %20 = dma.hbm_to_vmem [thread:$0]  %s0, 128, %s18, [#allocation3]
    $region5: #{tpu_custom_call.1} parent=1 // pred_fallthru
      _
    // Predicated region
    $region6: #{tpu_custom_call.1} parent=1 // pred_check
      _
    $region7: #{tpu_custom_call.1} parent=1 // pred_check_branch
      %22 = sbr.rel (0) target = $region9
    $region8: #{tpu_custom_call.1} parent=1 // pred_region
      %s24 = ssub.s32 1536, 1536
      %25 = vsyncadd [#allocation6], %s24
      %s26 = sshll.u32 [#allocation5], 4
      %s27 = int_to_ptr.vmem [resolvable:$true] %s26
      %32 = dma.hbm_to_vmem [thread:$0]  %s1, 1536, %s27, [#allocation6], 384, 384, 24
    $region9: #{tpu_custom_call.1} parent=1 // pred_fallthru
      _
    // Predicated region
    $region10: #{tpu_custom_call.1} parent=1 // pred_check
      _
    $region11: #{tpu_custom_call.1} parent=1 // pred_check_branch
      %34 = sbr.rel (0) target = $region13
    $region12: #{tpu_custom_call.1} parent=1 // pred_region
      _
    $region13: #{tpu_custom_call.1} parent=1 // pred_fallthru
      _
    // Predicated region
    $region14: #{tpu_custom_call.1} parent=1 // pred_check
      _
    $region15: #{tpu_custom_call.1} parent=1 // pred_check_branch
      %36 = sbr.rel (0) target = $region17
    $region16: #{tpu_custom_call.1} parent=1 // pred_region
      %37 = dma.done [#allocation3], 128
    $region17: #{tpu_custom_call.1} parent=1 // pred_fallthru
      _
    // Predicated region
    $region18: #{tpu_custom_call.1} parent=1 // pred_check
      _
    $region19: #{tpu_custom_call.1} parent=1 // pred_check_branch
      %39 = sbr.rel (0) target = $region21
    $region20: #{tpu_custom_call.1} parent=1 // pred_region
      %40 = dma.done [#allocation6], 1536
    $region21: #{tpu_custom_call.1} parent=1 // pred_fallthru
      _
    %v41 = vld [vmem:[#allocation2] sm:$0xff]
    %v42 = vld [vmem:[#allocation5] sm:$0xff]
    %v43 = vld [vmem:[#allocation5 + $0x8] sm:$0xff]
    %v44 = vld [vmem:[#allocation5 + $0x10] sm:$0xff]
    %v45 = vld [vmem:[#allocation5 + $0x18] sm:$0xff]
    %v46 = vld [vmem:[#allocation5 + $0x20] sm:$0xff]
    %v47 = vld [vmem:[#allocation5 + $0x28] sm:$0xff]
    %v48 = vld [vmem:[#allocation5 + $0x30] sm:$0xff]
    %v49 = vld [vmem:[#allocation5 + $0x38] sm:$0xff]
    %v50 = vld [vmem:[#allocation5 + $0x40] sm:$0xff]
    %v51 = vld [vmem:[#allocation5 + $0x48] sm:$0xff]
    %v52 = vld [vmem:[#allocation5 + $0x50] sm:$0xff]
    %v53 = vld [vmem:[#allocation5 + $0x58] sm:$0xff]
    %v54 = vld [vmem:[%s2] sm:$0x7]
    %v56 = vlaneseq
    %v57 = vshrl.u32 %v56, 7
    %v58 = vsub.s32 0, %v57
    %v59 = vrot.slane %v54, %v58
    %v60 = vlaneseq
    %v61 = vshrl.u32 %v60, 7
    %v62 = vsub.s32 1, %v61
    %v63 = vrot.slane %v54, %v62
    %v64 = vlaneseq
    %v65 = vshrl.u32 %v64, 7
    %v66 = vsub.s32 2, %v65
    %v67 = vrot.slane %v54, %v66
    %vm71 = vcmask 261120
    %v73 = vsel %vm71, %v41, 0
    %75 = vmatprep.subr.mxu0 %v43
    %76 = vmatpush1.msra.mxu0 %v42
    %77 = vmatprep.subr.mxu0 %v46
    %78 = vmatpush1.msra.mxu0 %v45
    %79 = vmatprep.subr.mxu0 %v49
    %80 = vmatpush1.msra.mxu0 %v48
    %81 = vmatprep.subr.mxu0 %v52
    %82 = vmatpush1.msra.mxu0 %v51
    %83 = vmatprep.subr.mxu0 0.0
    %84 = vmatpush1.msra.mxu0 0.0
    %85 = vmatprep.subr.mxu0 0.0
    %86 = vmatpush1.msra.mxu0 0.0
    %87 = vmatprep.subr.mxu0 0.0
    %88 = vmatpush1.msra.mxu0 0.0
    %89 = vmatprep.subr.mxu0 0.0
    %90 = vmatpush1.msra.mxu0 0.0
    %91 = vmatprep.subr.mxu0 0.0
    %92 = vmatpush1.msra.mxu0 0.0
    %93 = vmatprep.subr.mxu0 0.0
    %94 = vmatpush1.msra.mxu0 0.0
    %95 = vmatprep.subr.mxu0 0.0
    %96 = vmatpush1.msra.mxu0 0.0
    %97 = vmatprep.subr.mxu0 0.0
    %98 = vmatpush1.msra.mxu0 0.0
    %99 = vmatprep.subr.mxu0 0.0
    %100 = vmatpush1.msra.mxu0 0.0
    %101 = vmatprep.subr.mxu0 0.0
    %102 = vmatpush1.msra.mxu0 0.0
    %103 = vmatprep.subr.mxu0 0.0
    %104 = vmatpush1.msra.mxu0 0.0
    %105 = vmatprep.subr.mxu0 0.0
    %106 = vmatpush1.msra.mxu0 0.0
    %107 = vmatprep.subr.mxu0 0.0
    %108 = vmatpush1.msra.mxu0 0.0
    %109 = vmatprep.subr.mxu0 0.0
    %110 = vmatpush1.msra.mxu0 0.0
    %111 = vmatprep.subr.mxu0 0.0
    %112 = vmatpush1.msra.mxu0 0.0
    %113 = vmatprep.subr.mxu0 0.0
    %114 = vmatpush1.msra.mxu0 0.0
    %115 = vmatprep.subr.mxu0 0.0
    %116 = vmatpush1.msra.mxu0 0.0
    %117 = vmatprep.subr.mxu0 0.0
    %118 = vmatpush1.msra.mxu0 0.0
    %119 = vmatprep.subr.mxu0 0.0
    %120 = vmatpush1.msra.mxu0 0.0
    %121 = vmatprep.subr.mxu0 0.0
    %122 = vmatpush1.msra.mxu0 0.0
    %123 = vmatprep.subr.mxu0 0.0
    %124 = vmatpush1.msra.mxu0 0.0
    %125 = vmatprep.subr.mxu0 0.0
    %126 = vmatpush1.msra.mxu0 0.0
    %127 = vmatprep.subr.mxu0 0.0
    %128 = vmatpush1.msra.mxu0 0.0
    %129 = vmatprep.subr.mxu0 0.0
    %130 = vmatpush1.msra.mxu0 0.0
    %131 = vmatprep.subr.mxu0 0.0
    %132 = vmatpush1.msra.mxu0 0.0
    %133 = vmatprep.subr.mxu0 0.0
    %134 = vmatpush1.msra.mxu0 0.0
    %135 = vmatprep.subr.mxu0 0.0
    %136 = vmatpush1.msra.mxu0 0.0
    %137 = vmatprep.subr.mxu0 0.0
    %138 = vmatpush1.msra.mxu0 0.0
    %139 = vmatprep.mubr.f32.mxu0 0.0
    %140 = vmatmul.mubr.f32.gmra.mrb[0].mxu0 %v73
    %v141 = vpop.f32.mrb[0].mxu0
    %v142 = vadd.f32 %v59, %v141
    %v143 = vpop.f32.mrb[0].mxu0
    %v144 = vadd.f32 %v63, %v143
    %145 = vdwg.mxu0
    %146 = vmatprep.subr.mxu0 0.0
    %147 = vmatpush1.msra.mxu0 %v44
    %148 = vmatprep.subr.mxu0 0.0
    %149 = vmatpush1.msra.mxu0 %v47
    %150 = vmatprep.subr.mxu0 0.0
    %151 = vmatpush1.msra.mxu0 %v50
    %152 = vmatprep.subr.mxu0 0.0
    %153 = vmatpush1.msra.mxu0 %v53
    %154 = vmatprep.subr.mxu0 0.0
    %155 = vmatpush1.msra.mxu0 0.0
    %156 = vmatprep.subr.mxu0 0.0
    %157 = vmatpush1.msra.mxu0 0.0
    %158 = vmatprep.subr.mxu0 0.0
    %159 = vmatpush1.msra.mxu0 0.0
    %160 = vmatprep.subr.mxu0 0.0
    %161 = vmatpush1.msra.mxu0 0.0
    %162 = vmatprep.subr.mxu0 0.0
    %163 = vmatpush1.msra.mxu0 0.0
    %164 = vmatprep.subr.mxu0 0.0
    %165 = vmatpush1.msra.mxu0 0.0
    %166 = vmatprep.subr.mxu0 0.0
    %167 = vmatpush1.msra.mxu0 0.0
    %168 = vmatprep.subr.mxu0 0.0
    %169 = vmatpush1.msra.mxu0 0.0
    %170 = vmatprep.subr.mxu0 0.0
    %171 = vmatpush1.msra.mxu0 0.0
    %172 = vmatprep.subr.mxu0 0.0
    %173 = vmatpush1.msra.mxu0 0.0
    %174 = vmatprep.subr.mxu0 0.0
    %175 = vmatpush1.msra.mxu0 0.0
    %176 = vmatprep.subr.mxu0 0.0
    %177 = vmatpush1.msra.mxu0 0.0
    %178 = vmatprep.subr.mxu0 0.0
    %179 = vmatpush1.msra.mxu0 0.0
    %180 = vmatprep.subr.mxu0 0.0
    %181 = vmatpush1.msra.mxu0 0.0
    %182 = vmatprep.subr.mxu0 0.0
    %183 = vmatpush1.msra.mxu0 0.0
    %184 = vmatprep.subr.mxu0 0.0
    %185 = vmatpush1.msra.mxu0 0.0
    %186 = vmatprep.subr.mxu0 0.0
    %187 = vmatpush1.msra.mxu0 0.0
    %188 = vmatprep.subr.mxu0 0.0
    %189 = vmatpush1.msra.mxu0 0.0
    %190 = vmatprep.subr.mxu0 0.0
    %191 = vmatpush1.msra.mxu0 0.0
    %192 = vmatprep.subr.mxu0 0.0
    %193 = vmatpush1.msra.mxu0 0.0
    %194 = vmatprep.subr.mxu0 0.0
    %195 = vmatpush1.msra.mxu0 0.0
    %196 = vmatprep.subr.mxu0 0.0
    %197 = vmatpush1.msra.mxu0 0.0
    %198 = vmatprep.subr.mxu0 0.0
    %199 = vmatpush1.msra.mxu0 0.0
    %200 = vmatprep.subr.mxu0 0.0
    %201 = vmatpush1.msra.mxu0 0.0
    %202 = vmatprep.subr.mxu0 0.0
    %203 = vmatpush1.msra.mxu0 0.0
    %204 = vmatprep.subr.mxu0 0.0
    %205 = vmatpush1.msra.mxu0 0.0
    %206 = vmatprep.subr.mxu0 0.0
    %207 = vmatpush1.msra.mxu0 0.0
    %208 = vmatprep.subr.mxu0 0.0
    %209 = vmatpush1.msra.mxu0 0.0
    %210 = vmatprep.mubr.f32.mxu0 0.0
    %211 = vmatmul.mubr.f32.gmra.mrb[0].mxu0 %v73
    %v212 = vpop.f32.mrb[0].mxu0
    %v213 = vadd.f32 %v67, %v212
    %v214 = vpop.f32.mrb[0].mxu0
    %215 = vdwg.mxu0
    %v216 = vxor.u32 %v213, 2147483648
    %v217 = vmul.f32 %v216, 1.442695
    %v218 = vpow.pop %v217
    %v219 = vadd.f32 %v218, 1.0
    %v220 = vrcp.pop %v219
    %v221 = vmul.f32 1.0, %v220
    %v222 = vsub.f32 %v142, %v144
    %v223 = vmul.f32 %v221, %v222
    %v224 = vadd.f32 %v144, %v223
    %225 = vst [vmem:[#allocation7] sm:$0xff] %v224
    // Predicated region
    $region22: #{tpu_custom_call.1} parent=1 // pred_check
      _
    $region23: #{tpu_custom_call.1} parent=1 // pred_check_branch
      %227 = sbr.rel (0) target = $region25
    $region24: #{tpu_custom_call.1} parent=1 // pred_region
      %s229 = ssub.s32 128, 128
      %230 = vsyncadd [#allocation4], %s229
      %s232 = sshll.u32 [#allocation7], 4
      %s233 = int_to_ptr.vmem [resolvable:$true] %s232
      %235 = dma.vmem_to_hbm [thread:$0]  %s233, 128, %s3, [#allocation4]
    $region25: #{tpu_custom_call.1} parent=1 // pred_fallthru
      _
    // Predicated region
    $region26: #{tpu_custom_call.1} parent=1 // pred_check
      _
    $region27: #{tpu_custom_call.1} parent=1 // pred_check_branch
      %237 = sbr.rel (0) target = $region29
    $region28: #{tpu_custom_call.1} parent=1 // pred_region
      %238 = dma.done [#allocation4], 128
    $region29: #{tpu_custom_call.1} parent=1 // pred_fallthru
      _
    %239 = vsyncpa [#allocation3], 1
    %240 = vsyncpa [#allocation6], 1
    %241 = vsyncpa [#allocation4], 1

// kernel: tpu_custom_call.1
$region0: #{tpu_custom_call.1}
  #allocation0 [shape = 'u32[]', space=smem, size = 0x4, offset = 0x4, fixed_abs, tag = 'smem constant byte address 0x4 - core index']
  #allocation1 [shape = 'u32[144,128]{1,0:T(1,128)}', space=vmem, size = 0x12000, scoped, tag = 'internal scratch']
  %s0 = inlined_call_operand.hbm [shape: f32[8,32], index: 0, kind: input, shape index: {}]
  %s1 = inlined_call_operand.hbm [shape: f32[32,384], index: 1, kind: input, shape index: {}]
  %s2 = inlined_call_operand.vmem [shape: f32[1,384], index: 2, kind: input, shape index: {}]
  %s3 = inlined_call_operand.hbm [shape: f32[8,128], index: 3, kind: output, shape index: {}]
  %s4 = sld [smem:[#allocation0]]
  $region30: #{tpu_custom_call.1} parent=0
    _
  %s6 = ssub.s32 1, %s4
  %s7 = scalar_select 0, %s6, %s4
  $region1: #{tpu_custom_call.1} parent=0
    #allocation2 [shape = 'u8[4096]{0}', space=vmem, size = 0x1000, scoped, tag = 'input window, operand 0, single buffered']
    #allocation3 [shape = 's32[1]{0}', space=sflag, size = 0x4, scoped, tag = 'scoped memory for tpu_custom_call.1']
    #allocation4 [shape = 's32[1]{0}', space=sflag, size = 0x4, scoped, tag = 'scoped memory for tpu_custom_call.1']
    #allocation5 [shape = 'u8[49152]{0}', space=vmem, size = 0xc000, scoped, tag = 'input window, operand 1, single buffered']
    #allocation6 [shape = 's32[1]{0}', space=sflag, size = 0x4, scoped, tag = 'scoped memory for tpu_custom_call.1']
    #allocation7 [shape = 'u8[4096]{0}', space=vmem, size = 0x1000, scoped, tag = 'output window, operand 0, single buffered']
    %8 = vsyncpa [#allocation3], 0
    %9 = vsyncpa [#allocation6], 0
    %10 = vsyncpa [#allocation4], 0
    // Predicated region
    $region2: #{tpu_custom_call.1} parent=1 // pred_check
      _
    $region3: #{tpu_custom_call.1} parent=1 // pred_check_branch
      %12 = sbr.rel (0) target = $region5
    $region4: #{tpu_custom_call.1} parent=1 // pred_region
      %s14 = ssub.s32 128, 128
      %15 = vsyncadd [#allocation3], %s14
      %s17 = sshll.u32 [#allocation2], 4
      %s18 = int_to_ptr.vmem [resolvable:$true] %s17
      %20 = dma.hbm_to_vmem [thread:$0]  %s0, 128, %s18, [#allocation3]
    $region5: #{tpu_custom_call.1} parent=1 // pred_fallthru
      _
    // Predicated region
    $region6: #{tpu_custom_call.1} parent=1 // pred_check
      _
    $region7: #{tpu_custom_call.1} parent=1 // pred_check_branch
      %22 = sbr.rel (0) target = $region9
    $region8: #{tpu_custom_call.1} parent=1 // pred_region
      %s24 = ssub.s32 1536, 1536
      %25 = vsyncadd [#allocation6], %s24
      %s26 = sshll.u32 [#allocation5], 4
      %s27 = int_to_ptr.vmem [resolvable:$true] %s26
      %32 = dma.hbm_to_vmem [thread:$0]  %s1, 1536, %s27, [#allocation6], 384, 384, 24
    $region9: #{tpu_custom_call.1} parent=1 // pred_fallthru
      _
    // Predicated region
    $region10: #{tpu_custom_call.1} parent=1 // pred_check
      _
    $region11: #{tpu_custom_call.1} parent=1 // pred_check_branch
      %34 = sbr.rel (0) target = $region13
    $region12: #{tpu_custom_call.1} parent=1 // pred_region
      _
    $region13: #{tpu_custom_call.1} parent=1 // pred_fallthru
      _
    // Predicated region
    $region14: #{tpu_custom_call.1} parent=1 // pred_check
      _
    $region15: #{tpu_custom_call.1} parent=1 // pred_check_branch
      %36 = sbr.rel (0) target = $region17
    $region16: #{tpu_custom_call.1} parent=1 // pred_region
      %37 = dma.done [#allocation3], 128
    $region17: #{tpu_custom_call.1} parent=1 // pred_fallthru
      _
    // Predicated region
    $region18: #{tpu_custom_call.1} parent=1 // pred_check
      _
    $region19: #{tpu_custom_call.1} parent=1 // pred_check_branch
      %39 = sbr.rel (0) target = $region21
    $region20: #{tpu_custom_call.1} parent=1 // pred_region
      %40 = dma.done [#allocation6], 1536
    $region21: #{tpu_custom_call.1} parent=1 // pred_fallthru
      _
    %v41 = vld [vmem:[#allocation2] sm:$0xff]
    %v42 = vld [vmem:[#allocation5] sm:$0xff]
    %v43 = vld [vmem:[#allocation5 + $0x8] sm:$0xff]
    %v44 = vld [vmem:[#allocation5 + $0x10] sm:$0xff]
    %v45 = vld [vmem:[#allocation5 + $0x18] sm:$0xff]
    %v46 = vld [vmem:[#allocation5 + $0x20] sm:$0xff]
    %v47 = vld [vmem:[#allocation5 + $0x28] sm:$0xff]
    %v48 = vld [vmem:[#allocation5 + $0x30] sm:$0xff]
    %v49 = vld [vmem:[#allocation5 + $0x38] sm:$0xff]
    %v50 = vld [vmem:[#allocation5 + $0x40] sm:$0xff]
    %v51 = vld [vmem:[#allocation5 + $0x48] sm:$0xff]
    %v52 = vld [vmem:[#allocation5 + $0x50] sm:$0xff]
    %v53 = vld [vmem:[#allocation5 + $0x58] sm:$0xff]
    %v54 = vld [vmem:[%s2] sm:$0x7]
    %v56 = vlaneseq
    %v57 = vshrl.u32 %v56, 7
    %v58 = vsub.s32 0, %v57
    %v59 = vrot.slane %v54, %v58
    %v60 = vlaneseq
    %v61 = vshrl.u32 %v60, 7
    %v62 = vsub.s32 1, %v61
    %v63 = vrot.slane %v54, %v62
    %v64 = vlaneseq
    %v65 = vshrl.u32 %v64, 7
    %v66 = vsub.s32 2, %v65
    %v67 = vrot.slane %v54, %v66
    %vm71 = vcmask 261120
    %v73 = vsel %vm71, %v41, 0
    %75 = vmatprep.subr.mxu0 %v43
    %76 = vmatpush1.msra.mxu0 %v42
    %77 = vmatprep.subr.mxu0 %v46
    %78 = vmatpush1.msra.mxu0 %v45
    %79 = vmatprep.subr.mxu0 %v49
    %80 = vmatpush1.msra.mxu0 %v48
    %81 = vmatprep.subr.mxu0 %v52
    %82 = vmatpush1.msra.mxu0 %v51
    %83 = vmatprep.subr.mxu0 0.0
    %84 = vmatpush1.msra.mxu0 0.0
    %85 = vmatprep.subr.mxu0 0.0
    %86 = vmatpush1.msra.mxu0 0.0
    %87 = vmatprep.subr.mxu0 0.0
    %88 = vmatpush1.msra.mxu0 0.0
    %89 = vmatprep.subr.mxu0 0.0
    %90 = vmatpush1.msra.mxu0 0.0
    %91 = vmatprep.subr.mxu0 0.0
    %92 = vmatpush1.msra.mxu0 0.0
    %93 = vmatprep.subr.mxu0 0.0
    %94 = vmatpush1.msra.mxu0 0.0
    %95 = vmatprep.subr.mxu0 0.0
    %96 = vmatpush1.msra.mxu0 0.0
    %97 = vmatprep.subr.mxu0 0.0
    %98 = vmatpush1.msra.mxu0 0.0
    %99 = vmatprep.subr.mxu0 0.0
    %100 = vmatpush1.msra.mxu0 0.0
    %101 = vmatprep.subr.mxu0 0.0
    %102 = vmatpush1.msra.mxu0 0.0
    %103 = vmatprep.subr.mxu0 0.0
    %104 = vmatpush1.msra.mxu0 0.0
    %105 = vmatprep.subr.mxu0 0.0
    %106 = vmatpush1.msra.mxu0 0.0
    %107 = vmatprep.subr.mxu0 0.0
    %108 = vmatpush1.msra.mxu0 0.0
    %109 = vmatprep.subr.mxu0 0.0
    %110 = vmatpush1.msra.mxu0 0.0
    %111 = vmatprep.subr.mxu0 0.0
    %112 = vmatpush1.msra.mxu0 0.0
    %113 = vmatprep.subr.mxu0 0.0
    %114 = vmatpush1.msra.mxu0 0.0
    %115 = vmatprep.subr.mxu0 0.0
    %116 = vmatpush1.msra.mxu0 0.0
    %117 = vmatprep.subr.mxu0 0.0
    %118 = vmatpush1.msra.mxu0 0.0
    %119 = vmatprep.subr.mxu0 0.0
    %120 = vmatpush1.msra.mxu0 0.0
    %121 = vmatprep.subr.mxu0 0.0
    %122 = vmatpush1.msra.mxu0 0.0
    %123 = vmatprep.subr.mxu0 0.0
    %124 = vmatpush1.msra.mxu0 0.0
    %125 = vmatprep.subr.mxu0 0.0
    %126 = vmatpush1.msra.mxu0 0.0
    %127 = vmatprep.subr.mxu0 0.0
    %128 = vmatpush1.msra.mxu0 0.0
    %129 = vmatprep.subr.mxu0 0.0
    %130 = vmatpush1.msra.mxu0 0.0
    %131 = vmatprep.subr.mxu0 0.0
    %132 = vmatpush1.msra.mxu0 0.0
    %133 = vmatprep.subr.mxu0 0.0
    %134 = vmatpush1.msra.mxu0 0.0
    %135 = vmatprep.subr.mxu0 0.0
    %136 = vmatpush1.msra.mxu0 0.0
    %137 = vmatprep.subr.mxu0 0.0
    %138 = vmatpush1.msra.mxu0 0.0
    %139 = vmatprep.mubr.f32.mxu0 0.0
    %140 = vmatmul.mubr.f32.gmra.mrb[0].mxu0 %v73
    %v141 = vpop.f32.mrb[0].mxu0
    %v142 = vadd.f32 %v59, %v141
    %v143 = vpop.f32.mrb[0].mxu0
    %v144 = vadd.f32 %v63, %v143
    %145 = vdwg.mxu0
    %146 = vmatprep.subr.mxu0 0.0
    %147 = vmatpush1.msra.mxu0 %v44
    %148 = vmatprep.subr.mxu0 0.0
    %149 = vmatpush1.msra.mxu0 %v47
    %150 = vmatprep.subr.mxu0 0.0
    %151 = vmatpush1.msra.mxu0 %v50
    %152 = vmatprep.subr.mxu0 0.0
    %153 = vmatpush1.msra.mxu0 %v53
    %154 = vmatprep.subr.mxu0 0.0
    %155 = vmatpush1.msra.mxu0 0.0
    %156 = vmatprep.subr.mxu0 0.0
    %157 = vmatpush1.msra.mxu0 0.0
    %158 = vmatprep.subr.mxu0 0.0
    %159 = vmatpush1.msra.mxu0 0.0
    %160 = vmatprep.subr.mxu0 0.0
    %161 = vmatpush1.msra.mxu0 0.0
    %162 = vmatprep.subr.mxu0 0.0
    %163 = vmatpush1.msra.mxu0 0.0
    %164 = vmatprep.subr.mxu0 0.0
    %165 = vmatpush1.msra.mxu0 0.0
    %166 = vmatprep.subr.mxu0 0.0
    %167 = vmatpush1.msra.mxu0 0.0
    %168 = vmatprep.subr.mxu0 0.0
    %169 = vmatpush1.msra.mxu0 0.0
    %170 = vmatprep.subr.mxu0 0.0
    %171 = vmatpush1.msra.mxu0 0.0
    %172 = vmatprep.subr.mxu0 0.0
    %173 = vmatpush1.msra.mxu0 0.0
    %174 = vmatprep.subr.mxu0 0.0
    %175 = vmatpush1.msra.mxu0 0.0
    %176 = vmatprep.subr.mxu0 0.0
    %177 = vmatpush1.msra.mxu0 0.0
    %178 = vmatprep.subr.mxu0 0.0
    %179 = vmatpush1.msra.mxu0 0.0
    %180 = vmatprep.subr.mxu0 0.0
    %181 = vmatpush1.msra.mxu0 0.0
    %182 = vmatprep.subr.mxu0 0.0
    %183 = vmatpush1.msra.mxu0 0.0
    %184 = vmatprep.subr.mxu0 0.0
    %185 = vmatpush1.msra.mxu0 0.0
    %186 = vmatprep.subr.mxu0 0.0
    %187 = vmatpush1.msra.mxu0 0.0
    %188 = vmatprep.subr.mxu0 0.0
    %189 = vmatpush1.msra.mxu0 0.0
    %190 = vmatprep.subr.mxu0 0.0
    %191 = vmatpush1.msra.mxu0 0.0
    %192 = vmatprep.subr.mxu0 0.0
    %193 = vmatpush1.msra.mxu0 0.0
    %194 = vmatprep.subr.mxu0 0.0
    %195 = vmatpush1.msra.mxu0 0.0
    %196 = vmatprep.subr.mxu0 0.0
    %197 = vmatpush1.msra.mxu0 0.0
    %198 = vmatprep.subr.mxu0 0.0
    %199 = vmatpush1.msra.mxu0 0.0
    %200 = vmatprep.subr.mxu0 0.0
    %201 = vmatpush1.msra.mxu0 0.0
    %202 = vmatprep.subr.mxu0 0.0
    %203 = vmatpush1.msra.mxu0 0.0
    %204 = vmatprep.subr.mxu0 0.0
    %205 = vmatpush1.msra.mxu0 0.0
    %206 = vmatprep.subr.mxu0 0.0
    %207 = vmatpush1.msra.mxu0 0.0
    %208 = vmatprep.subr.mxu0 0.0
    %209 = vmatpush1.msra.mxu0 0.0
    %210 = vmatprep.mubr.f32.mxu0 0.0
    %211 = vmatmul.mubr.f32.gmra.mrb[0].mxu0 %v73
    %v212 = vpop.f32.mrb[0].mxu0
    %v213 = vadd.f32 %v67, %v212
    %v214 = vpop.f32.mrb[0].mxu0
    %215 = vdwg.mxu0
    %v216 = vxor.u32 %v213, 2147483648
    %v217 = vmul.f32 %v216, 1.442695
    %v218 = vpow.pop %v217
    %v219 = vadd.f32 %v218, 1.0
    %v220 = vrcp.pop %v219
    %v221 = vmul.f32 1.0, %v220
    %v222 = vsub.f32 %v142, %v144
    %v223 = vmul.f32 %v221, %v222
    %v224 = vadd.f32 %v144, %v223
    %225 = vst [vmem:[#allocation7] sm:$0xff] %v224
    // Predicated region
    $region22: #{tpu_custom_call.1} parent=1 // pred_check
      _
    $region23: #{tpu_custom_call.1} parent=1 // pred_check_branch
      %227 = sbr.rel (0) target = $region25
    $region24: #{tpu_custom_call.1} parent=1 // pred_region
      %s229 = ssub.s32 128, 128
      %230 = vsyncadd [#allocation4], %s229
      %s232 = sshll.u32 [#allocation7], 4
      %s233 = int_to_ptr.vmem [resolvable:$true] %s232
      %235 = dma.vmem_to_hbm [thread:$0]  %s233, 128, %s3, [#allocation4]
    $region25: #{tpu_custom_call.1} parent=1 // pred_fallthru
      _
    // Predicated region
    $region26: #{tpu_custom_call.1} parent=1 // pred_check
      _
    $region27: #{tpu_custom_call.1} parent=1 // pred_check_branch
      %237 = sbr.rel (0) target = $region29
    $region28: #{tpu_custom_call.1} parent=1 // pred_region
      %238 = dma.done [#allocation4], 128
    $region29: #{tpu_custom_call.1} parent=1 // pred_fallthru
      _
    %239 = vsyncpa [#allocation3], 1
    %240 = vsyncpa [#allocation6], 1
    %241 = vsyncpa [#allocation4], 1

</llo_original>
